<compile_context>
chip_gen: v7x
topology: tpu7x:2x2x1
jax: 0.10.0
libtpu: 0.0.40
codegen_flags: <defaults>
</compile_context>

<pallas_src>
import functools

import jax
import jax.numpy as jnp
from jax.experimental import pallas as pl
from jax.experimental.pallas import tpu as pltpu


def _round_up(x, m):
    return ((x + m - 1) // m) * m


def _ce_kernel(yp_ref, yt_ref, o_ref, m_ref, l_ref, dot_ref, ts_ref,
               *, n_rows, n_cols, tile_m, tile_c):
    mi = pl.program_id(0)          # batch-tile index ("parallel")
    ci = pl.program_id(1)          # class-tile index ("arbitrary" reduction)
    nc = pl.num_programs(1)

    @pl.when(ci == 0)
    def _():
        m_ref[...] = jnp.full(m_ref.shape, -jnp.inf, dtype=m_ref.dtype)
        l_ref[...] = jnp.zeros(l_ref.shape, l_ref.dtype)
        dot_ref[...] = jnp.zeros(dot_ref.shape, dot_ref.dtype)
        ts_ref[...] = jnp.zeros(ts_ref.shape, ts_ref.dtype)

    yp = yp_ref[...].astype(jnp.float32)      # (tile_m, tile_c)
    yt = yt_ref[...].astype(jnp.float32)      # (tile_m, tile_c)

    if n_cols % tile_c != 0:
        # Last class block hangs over the array edge: mask out-of-range lanes.
        col = jax.lax.broadcasted_iota(jnp.int32, (tile_m, tile_c), 1)
        col_ok = (col + ci * tile_c) < n_cols
        yp_lse = jnp.where(col_ok, yp, -jnp.inf)     # ignored by max / exp
        yt = jnp.where(col_ok, yt, 0.0)
        prod = jnp.where(col_ok, yt * yp, 0.0)       # explicit mask (avoid 0*inf)
    else:
        yp_lse = yp
        prod = yt * yp

    # Online logsumexp over class blocks (per row).
    m_prev = m_ref[...]                                           # (tile_m, 1)
    m_new = jnp.maximum(m_prev, jnp.max(yp_lse, axis=1, keepdims=True))
    alpha = jnp.exp(m_prev - m_new)
    l_ref[...] = l_ref[...] * alpha + jnp.sum(
        jnp.exp(yp_lse - m_new), axis=1, keepdims=True)
    m_ref[...] = m_new
    dot_ref[...] += jnp.sum(prod, axis=1, keepdims=True)          # sum_c yt*yp
    ts_ref[...] += jnp.sum(yt, axis=1, keepdims=True)             # sum_c yt

    @pl.when(ci == nc - 1)
    def _():
        # sum_c yt * log_softmax(yp) = sum_c yt*yp - (m + log l) * sum_c yt
        row = dot_ref[...] - (m_ref[...] + jnp.log(l_ref[...])) * ts_ref[...]
        if n_rows % tile_m != 0:
            # Last batch block hangs over the array edge: zero invalid rows.
            r = jax.lax.broadcasted_iota(jnp.int32, (tile_m, 1), 0) + mi * tile_m
            row = jnp.where(r < n_rows, row, 0.0)
        partial = jnp.sum(row)                                    # scalar f32
        sub_i = jax.lax.broadcasted_iota(jnp.int32, (8, 128), 0)
        lane_i = jax.lax.broadcasted_iota(jnp.int32, (8, 128), 1)
        # Lane-dense (unmasked) store of this block's partial sum at [0, 0].
        o_ref[...] = jnp.where((sub_i == 0) & (lane_i == 0), partial, 0.0)


def ce_loss(y_pred, y_true, *, vmem_budget_bytes=24 << 20, max_tile_m=1024):
    """-mean_n sum_c y_true * log_softmax(y_pred, axis=1) for (N, C) inputs.

    `vmem_budget_bytes` bounds 2 inputs x 2 pipeline buffers of one tile; the
    default (24 MiB) keeps the requested scoped VMEM ~32 MiB, safe on
    v5e/v6e (128 MiB) and v7x (64 MiB physical).
    """
    assert y_pred.shape == y_true.shape and y_pred.ndim == 2
    N, C = y_pred.shape
    itemsize = max(jnp.dtype(y_pred.dtype).itemsize,
                   jnp.dtype(y_true.dtype).itemsize)
    sub_mult = 8 if itemsize >= 4 else 16     # sublane packing (f32 vs bf16)
    lane = 128

    want_m = min(max_tile_m, _round_up(N, sub_mult))
    min_useful_m = min(want_m, 256)

    # Prefer the full class axis per block if a useful batch tile still fits;
    # otherwise tile the class axis (large-vocab path, online logsumexp).
    if 4 * C * itemsize * min_useful_m <= vmem_budget_bytes:
        tile_c = C
    else:
        tile_c = (vmem_budget_bytes // (4 * min_useful_m * itemsize)) // lane * lane
        tile_c = max(lane, tile_c)
        tile_c = min(tile_c, _round_up(C, lane))
    tile_m = (vmem_budget_bytes // (4 * tile_c * itemsize)) // sub_mult * sub_mult
    tile_m = max(sub_mult, min(want_m, tile_m))

    grid_m = (N + tile_m - 1) // tile_m
    grid_c = (C + tile_c - 1) // tile_c

    # Explicit scoped-VMEM request derived from the chosen tiles.
    in_bytes = 4 * tile_m * tile_c * itemsize          # 2 inputs x 2 buffers
    scratch_bytes = 4 * tile_m * lane * 4              # 4 lane-padded (tile_m,1) f32
    out_bytes = 2 * 8 * lane * 4
    vmem_limit = int(max(in_bytes + scratch_bytes + out_bytes + (4 << 20),
                         32 << 20))

    kernel = functools.partial(_ce_kernel, n_rows=N, n_cols=C,
                               tile_m=tile_m, tile_c=tile_c)

    partials = pl.pallas_call(
        kernel,
        out_shape=jax.ShapeDtypeStruct((grid_m * 8, 128), jnp.float32),
        grid_spec=pltpu.PrefetchScalarGridSpec(
            num_scalar_prefetch=0,
            grid=(grid_m, grid_c),
            in_specs=[
                pl.BlockSpec((tile_m, tile_c), lambda mi, ci: (mi, ci)),
                pl.BlockSpec((tile_m, tile_c), lambda mi, ci: (mi, ci)),
            ],
            out_specs=pl.BlockSpec((8, 128), lambda mi, ci: (mi, 0)),
            scratch_shapes=[pltpu.VMEM((tile_m, 1), jnp.float32)] * 4,
        ),
        compiler_params=pltpu.CompilerParams(
            dimension_semantics=("parallel", "arbitrary"),
            vmem_limit_bytes=vmem_limit,
        ),
    )(y_pred, y_true)

    # Tiny final reduction + mean outside the kernel (keeps batch axis parallel).
    return -jnp.sum(partials) / N


def _ce_ref(y_pred, y_true):
    yp = y_pred.astype(jnp.float32)
    yt = y_true.astype(jnp.float32)
    log_sm = jax.nn.log_softmax(yp, axis=1)
    return -jnp.mean(jnp.sum(yt * log_sm, axis=1))


if __name__ == "__main__":
    key = jax.random.PRNGKey(0)
    k1, k2, k3, k4 = jax.random.split(key, 4)

    # Case 1: small, aligned shapes (single block on both axes).
    N, C = 16, 128
    y_pred = jax.random.normal(k1, (N, C), dtype=jnp.float32)
    y_true = jax.nn.softmax(jax.random.normal(k2, (N, C), dtype=jnp.float32), axis=1)
    loss = jax.block_until_ready(ce_loss(y_pred, y_true))
    ref = jax.block_until_ready(_ce_ref(y_pred, y_true))
    assert jnp.allclose(loss, ref, atol=1e-4, rtol=1e-4), (loss, ref)

    # Case 2: ragged N and a tiny VMEM budget to force class-axis tiling
    # (exercises the row-mask, column-mask and online-logsumexp paths).
    N2, C2 = 13, 384
    y_pred2 = jax.random.normal(k3, (N2, C2), dtype=jnp.float32)
    y_true2 = jax.nn.softmax(jax.random.normal(k4, (N2, C2), dtype=jnp.float32), axis=1)
    loss2 = jax.block_until_ready(
        ce_loss(y_pred2, y_true2, vmem_budget_bytes=64 * 1024))
    ref2 = jax.block_until_ready(_ce_ref(y_pred2, y_true2))
    assert jnp.allclose(loss2, ref2, atol=1e-4, rtol=1e-4), (loss2, ref2)

    print("KERNEL_OK")
</pallas_src>

<mosaic_0001>
module attributes {stable_mosaic.version = 11 : i64} {
  func.func @_ce_kernel(%arg0: i32, %arg1: i32, %arg2: memref<16x128xf32, #tpu.memory_space<vmem>>, %arg3: memref<16x128xf32, #tpu.memory_space<vmem>>, %arg4: memref<8x128xf32, #tpu.memory_space<vmem>>, %arg5: memref<16x1xf32, #tpu.memory_space<vmem>>, %arg6: memref<16x1xf32, #tpu.memory_space<vmem>>, %arg7: memref<16x1xf32, #tpu.memory_space<vmem>>, %arg8: memref<16x1xf32, #tpu.memory_space<vmem>>) attributes {dimension_semantics = [#tpu.dimension_semantics<parallel>, #tpu.dimension_semantics<arbitrary>], iteration_bounds = array<i64: 1, 1>, scalar_prefetch = 0 : i64, scratch_operands = 4 : i64, tpu.core_type = #tpu.core_type<tc>, window_params = [{transform_indices = @transform_0, window_bounds = array<i64: 16, 128>}, {transform_indices = @transform_1, window_bounds = array<i64: 16, 128>}, {transform_indices = @transform_2, window_bounds = array<i64: 8, 128>}]} {
    %c0_i32 = arith.constant 0 : i32
    %0 = arith.cmpi eq, %arg1, %c0_i32 : i32
    %1 = arith.extui %0 : i1 to i32
    %c0_i32_0 = arith.constant 0 : i32
    %2 = arith.cmpi ne, %1, %c0_i32_0 : i32
    scf.if %2 {
      %cst_25 = arith.constant 0xFF800000 : f32
      %35 = vector.broadcast %cst_25 : f32 to vector<16x1xf32>
      %c0_26 = arith.constant 0 : index
      %c0_27 = arith.constant 0 : index
      %36 = vector.load %arg5[%c0_26, %c0_27] : memref<16x1xf32, #tpu.memory_space<vmem>>, vector<16x1xf32>
      tpu.vector_store %arg5[%c0_26, %c0_27], %35 {strides = array<i32>} : memref<16x1xf32, #tpu.memory_space<vmem>>, vector<16x1xf32>,
      %cst_28 = arith.constant 0.000000e+00 : f32
      %37 = vector.broadcast %cst_28 : f32 to vector<16x1xf32>
      %c0_29 = arith.constant 0 : index
      %c0_30 = arith.constant 0 : index
      %38 = vector.load %arg6[%c0_29, %c0_30] : memref<16x1xf32, #tpu.memory_space<vmem>>, vector<16x1xf32>
      tpu.vector_store %arg6[%c0_29, %c0_30], %37 {strides = array<i32>} : memref<16x1xf32, #tpu.memory_space<vmem>>, vector<16x1xf32>,
      %cst_31 = arith.constant 0.000000e+00 : f32
      %39 = vector.broadcast %cst_31 : f32 to vector<16x1xf32>
      %c0_32 = arith.constant 0 : index
      %c0_33 = arith.constant 0 : index
      %40 = vector.load %arg7[%c0_32, %c0_33] : memref<16x1xf32, #tpu.memory_space<vmem>>, vector<16x1xf32>
      tpu.vector_store %arg7[%c0_32, %c0_33], %39 {strides = array<i32>} : memref<16x1xf32, #tpu.memory_space<vmem>>, vector<16x1xf32>,
      %cst_34 = arith.constant 0.000000e+00 : f32
      %41 = vector.broadcast %cst_34 : f32 to vector<16x1xf32>
      %c0_35 = arith.constant 0 : index
      %c0_36 = arith.constant 0 : index
      %42 = vector.load %arg8[%c0_35, %c0_36] : memref<16x1xf32, #tpu.memory_space<vmem>>, vector<16x1xf32>
      tpu.vector_store %arg8[%c0_35, %c0_36], %41 {strides = array<i32>} : memref<16x1xf32, #tpu.memory_space<vmem>>, vector<16x1xf32>,
    } else {
    }
    %c0 = arith.constant 0 : index
    %c0_1 = arith.constant 0 : index
    %3 = vector.load %arg2[%c0, %c0_1] : memref<16x128xf32, #tpu.memory_space<vmem>>, vector<16x128xf32>
    %c0_2 = arith.constant 0 : index
    %c0_3 = arith.constant 0 : index
    %4 = vector.load %arg3[%c0_2, %c0_3] : memref<16x128xf32, #tpu.memory_space<vmem>>, vector<16x128xf32>
    %5 = arith.mulf %4, %3 : vector<16x128xf32>
    %c0_4 = arith.constant 0 : index
    %c0_5 = arith.constant 0 : index
    %6 = vector.load %arg5[%c0_4, %c0_5] : memref<16x1xf32, #tpu.memory_space<vmem>>, vector<16x1xf32>
    %cst = arith.constant dense<0xFF800000> : vector<16xf32>
    %7 = vector.multi_reduction <maximumf>, %3, %cst [1] : vector<16x128xf32> to vector<16xf32>
    %8 = vector.shape_cast %7 : vector<16xf32> to vector<16x1xf32>
    %9 = arith.maximumf %6, %8 : vector<16x1xf32>
    %10 = arith.subf %6, %9 : vector<16x1xf32>
    %11 = math.exp %10 : vector<16x1xf32>
    %c0_6 = arith.constant 0 : index
    %c0_7 = arith.constant 0 : index
    %12 = vector.load %arg6[%c0_6, %c0_7] : memref<16x1xf32, #tpu.memory_space<vmem>>, vector<16x1xf32>
    %13 = arith.mulf %12, %11 : vector<16x1xf32>
    %14 = vector.broadcast %9 : vector<16x1xf32> to vector<16x128xf32>
    %15 = arith.subf %3, %14 : vector<16x128xf32>
    %16 = math.exp %15 : vector<16x128xf32>
    %cst_8 = arith.constant dense<0.000000e+00> : vector<16xf32>
    %17 = vector.multi_reduction <add>, %16, %cst_8 [1] : vector<16x128xf32> to vector<16xf32>
    %18 = vector.shape_cast %17 : vector<16xf32> to vector<16x1xf32>
    %19 = arith.addf %13, %18 : vector<16x1xf32>
    %c0_9 = arith.constant 0 : index
    %c0_10 = arith.constant 0 : index
    %20 = vector.load %arg6[%c0_9, %c0_10] : memref<16x1xf32, #tpu.memory_space<vmem>>, vector<16x1xf32>
    tpu.vector_store %arg6[%c0_9, %c0_10], %19 {strides = array<i32>} : memref<16x1xf32, #tpu.memory_space<vmem>>, vector<16x1xf32>,
    %c0_11 = arith.constant 0 : index
    %c0_12 = arith.constant 0 : index
    %21 = vector.load %arg5[%c0_11, %c0_12] : memref<16x1xf32, #tpu.memory_space<vmem>>, vector<16x1xf32>
    tpu.vector_store %arg5[%c0_11, %c0_12], %9 {strides = array<i32>} : memref<16x1xf32, #tpu.memory_space<vmem>>, vector<16x1xf32>,
    %c0_13 = arith.constant 0 : index
    %c0_14 = arith.constant 0 : index
    %22 = vector.load %arg7[%c0_13, %c0_14] : memref<16x1xf32, #tpu.memory_space<vmem>>, vector<16x1xf32>
    %cst_15 = arith.constant dense<0.000000e+00> : vector<16xf32>
    %23 = vector.multi_reduction <add>, %5, %cst_15 [1] : vector<16x128xf32> to vector<16xf32>
    %24 = vector.shape_cast %23 : vector<16xf32> to vector<16x1xf32>
    %25 = arith.addf %22, %24 : vector<16x1xf32>
    %c0_16 = arith.constant 0 : index
    %c0_17 = arith.constant 0 : index
    %26 = vector.load %arg7[%c0_16, %c0_17] : memref<16x1xf32, #tpu.memory_space<vmem>>, vector<16x1xf32>
    tpu.vector_store %arg7[%c0_16, %c0_17], %25 {strides = array<i32>} : memref<16x1xf32, #tpu.memory_space<vmem>>, vector<16x1xf32>,
    %c0_18 = arith.constant 0 : index
    %c0_19 = arith.constant 0 : index
    %27 = vector.load %arg8[%c0_18, %c0_19] : memref<16x1xf32, #tpu.memory_space<vmem>>, vector<16x1xf32>
    %cst_20 = arith.constant dense<0.000000e+00> : vector<16xf32>
    %28 = vector.multi_reduction <add>, %4, %cst_20 [1] : vector<16x128xf32> to vector<16xf32>
    %29 = vector.shape_cast %28 : vector<16xf32> to vector<16x1xf32>
    %30 = arith.addf %27, %29 : vector<16x1xf32>
    %c0_21 = arith.constant 0 : index
    %c0_22 = arith.constant 0 : index
    %31 = vector.load %arg8[%c0_21, %c0_22] : memref<16x1xf32, #tpu.memory_space<vmem>>, vector<16x1xf32>
    tpu.vector_store %arg8[%c0_21, %c0_22], %30 {strides = array<i32>} : memref<16x1xf32, #tpu.memory_space<vmem>>, vector<16x1xf32>,
    %c0_i32_23 = arith.constant 0 : i32
    %32 = arith.cmpi eq, %arg1, %c0_i32_23 : i32
    %33 = arith.extui %32 : i1 to i32
    %c0_i32_24 = arith.constant 0 : i32
    %34 = arith.cmpi ne, %33, %c0_i32_24 : i32
    scf.if %34 {
      %c0_25 = arith.constant 0 : index
      %c0_26 = arith.constant 0 : index
      %35 = vector.load %arg7[%c0_25, %c0_26] : memref<16x1xf32, #tpu.memory_space<vmem>>, vector<16x1xf32>
      %c0_27 = arith.constant 0 : index
      %c0_28 = arith.constant 0 : index
      %36 = vector.load %arg5[%c0_27, %c0_28] : memref<16x1xf32, #tpu.memory_space<vmem>>, vector<16x1xf32>
      %c0_29 = arith.constant 0 : index
      %c0_30 = arith.constant 0 : index
      %37 = vector.load %arg6[%c0_29, %c0_30] : memref<16x1xf32, #tpu.memory_space<vmem>>, vector<16x1xf32>
      %38 = math.log %37 : vector<16x1xf32>
      %39 = arith.addf %36, %38 : vector<16x1xf32>
      %c0_31 = arith.constant 0 : index
      %c0_32 = arith.constant 0 : index
      %40 = vector.load %arg8[%c0_31, %c0_32] : memref<16x1xf32, #tpu.memory_space<vmem>>, vector<16x1xf32>
      %41 = arith.mulf %39, %40 : vector<16x1xf32>
      %42 = arith.subf %35, %41 : vector<16x1xf32>
      %43 = vector.shape_cast %42 : vector<16x1xf32> to vector<1x16x1xf32>
      %cst_33 = arith.constant dense<0.000000e+00> : vector<1xf32>
      %44 = vector.multi_reduction <add>, %43, %cst_33 [1, 2] : vector<1x16x1xf32> to vector<1xf32>
      %45 = vector.shape_cast %44 : vector<1xf32> to vector<1x1x1xf32>
      %46 = vector.extract %45[0, 0, 0] : f32 from vector<1x1x1xf32>
      %47 = tpu.iota {dimensions = array<i32: 0>} : vector<8x128xi32>
      %48 = tpu.iota {dimensions = array<i32: 1>} : vector<8x128xi32>
      %c0_i32_34 = arith.constant 0 : i32
      %49 = vector.broadcast %c0_i32_34 : i32 to vector<8x128xi32>
      %50 = arith.cmpi eq, %47, %49 : vector<8x128xi32>
      %c0_i32_35 = arith.constant 0 : i32
      %51 = vector.broadcast %c0_i32_35 : i32 to vector<8x128xi32>
      %52 = arith.cmpi eq, %48, %51 : vector<8x128xi32>
      %53 = arith.andi %50, %52 : vector<8x128xi1>
      %cst_36 = arith.constant 0.000000e+00 : f32
      %54 = vector.broadcast %46 : f32 to vector<8x128xf32>
      %55 = vector.broadcast %cst_36 : f32 to vector<8x128xf32>
      %56 = arith.select %53, %54, %55 : vector<8x128xi1>, vector<8x128xf32>
      %c0_37 = arith.constant 0 : index
      %c0_38 = arith.constant 0 : index
      %57 = vector.load %arg4[%c0_37, %c0_38] : memref<8x128xf32, #tpu.memory_space<vmem>>, vector<8x128xf32>
      tpu.vector_store %arg4[%c0_37, %c0_38], %56 {strides = array<i32>} : memref<8x128xf32, #tpu.memory_space<vmem>>, vector<8x128xf32>,
    } else {
    }
    return
  }
  func.func @transform_0(%arg0: i32, %arg1: i32) -> (i32, i32) {
    %c0_i32 = arith.constant 0 : i32
    return %arg0, %arg1 : i32, i32
  }
  func.func @transform_1(%arg0: i32, %arg1: i32) -> (i32, i32) {
    %c0_i32 = arith.constant 0 : i32
    return %arg0, %arg1 : i32, i32
  }
  func.func @transform_2(%arg0: i32, %arg1: i32) -> (i32, i32) {
    %c0_i32 = arith.constant 0 : i32
    %c0_i32_0 = arith.constant 0 : i32
    return %arg0, %c0_i32 : i32, i32
  }
}

</mosaic_0001>

<llo_original>
// kernel: tpu_custom_call.1
$region0: #{tpu_custom_call.1}
  #allocation0 [shape = 'u32[]', space=smem, size = 0x4, offset = 0x4, fixed_abs, tag = 'smem constant byte address 0x4 - core index']
  #allocation1 [shape = 'u32[144,128]{1,0:T(1,128)}', space=vmem, size = 0x12000, scoped, tag = 'internal scratch']
  #allocation2 [shape = 'f32[16,1]{1,0:T(8,128)}', space=vmem, size = 0x2000, scoped, tag = 'scratch operand']
  #allocation3 [shape = 'f32[16,1]{1,0:T(8,128)}', space=vmem, size = 0x2000, scoped, tag = 'scratch operand']
  #allocation4 [shape = 'f32[16,1]{1,0:T(8,128)}', space=vmem, size = 0x2000, scoped, tag = 'scratch operand']
  #allocation5 [shape = 'f32[16,1]{1,0:T(8,128)}', space=vmem, size = 0x2000, scoped, tag = 'scratch operand']
  %s0 = inlined_call_operand.hbm [shape: f32[16,128], index: 0, kind: input, shape index: {}]
  %s1 = inlined_call_operand.hbm [shape: f32[16,128], index: 1, kind: input, shape index: {}]
  %s2 = inlined_call_operand.hbm [shape: f32[8,128], index: 2, kind: output, shape index: {}]
  %s3 = sld [smem:[#allocation0]]
  $region34: #{tpu_custom_call.1} parent=0
    _
  %s5 = ssub.s32 1, %s3
  %s6 = scalar_select 0, %s5, %s3
  $region1: #{tpu_custom_call.1} parent=0
    #allocation6 [shape = 'u8[8192]{0}', space=vmem, size = 0x2000, scoped, tag = 'input window, operand 0, single buffered']
    #allocation7 [shape = 's32[1]{0}', space=sflag, size = 0x4, scoped, tag = 'scoped memory for tpu_custom_call.1']
    #allocation8 [shape = 's32[1]{0}', space=sflag, size = 0x4, scoped, tag = 'scoped memory for tpu_custom_call.1']
    #allocation9 [shape = 'u8[8192]{0}', space=vmem, size = 0x2000, scoped, tag = 'input window, operand 1, single buffered']
    #allocation10 [shape = 's32[1]{0}', space=sflag, size = 0x4, scoped, tag = 'scoped memory for tpu_custom_call.1']
    #allocation11 [shape = 'u8[4096]{0}', space=vmem, size = 0x1000, scoped, tag = 'output window, operand 0, single buffered']
    %7 = vsyncpa [#allocation7], 0
    %8 = vsyncpa [#allocation10], 0
    %9 = vsyncpa [#allocation8], 0
    // Predicated region
    $region2: #{tpu_custom_call.1} parent=1 // pred_check
      _
    $region3: #{tpu_custom_call.1} parent=1 // pred_check_branch
      %11 = sbr.rel (0) target = $region5
    $region4: #{tpu_custom_call.1} parent=1 // pred_region
      %s13 = ssub.s32 256, 256
      %14 = vsyncadd [#allocation7], %s13
      %s15 = sshll.u32 [#allocation6], 4
      %s16 = int_to_ptr.vmem [resolvable:$true] %s15
      %21 = dma.hbm_to_vmem [thread:$0]  %s0, 256, %s16, [#allocation7], 128, 128, 8
    $region5: #{tpu_custom_call.1} parent=1 // pred_fallthru
      _
    // Predicated region
    $region6: #{tpu_custom_call.1} parent=1 // pred_check
      _
    $region7: #{tpu_custom_call.1} parent=1 // pred_check_branch
      %23 = sbr.rel (0) target = $region9
    $region8: #{tpu_custom_call.1} parent=1 // pred_region
      %s25 = ssub.s32 256, 256
      %26 = vsyncadd [#allocation10], %s25
      %s27 = sshll.u32 [#allocation9], 4
      %s28 = int_to_ptr.vmem [resolvable:$true] %s27
      %33 = dma.hbm_to_vmem [thread:$0]  %s1, 256, %s28, [#allocation10], 128, 128, 8
    $region9: #{tpu_custom_call.1} parent=1 // pred_fallthru
      _
    // Predicated region
    $region10: #{tpu_custom_call.1} parent=1 // pred_check
      _
    $region11: #{tpu_custom_call.1} parent=1 // pred_check_branch
      %35 = sbr.rel (0) target = $region13
    $region12: #{tpu_custom_call.1} parent=1 // pred_region
      %36 = dma.done [#allocation7], 256
    $region13: #{tpu_custom_call.1} parent=1 // pred_fallthru
      _
    // Predicated region
    $region14: #{tpu_custom_call.1} parent=1 // pred_check
      _
    $region15: #{tpu_custom_call.1} parent=1 // pred_check_branch
      %38 = sbr.rel (0) target = $region17
    $region16: #{tpu_custom_call.1} parent=1 // pred_region
      %39 = dma.done [#allocation10], 256
    $region17: #{tpu_custom_call.1} parent=1 // pred_fallthru
      _
    %p40 = scmp.eq.s32.totalorder 0, 0
    // Predicated region
    $region18: #{tpu_custom_call.1} parent=1 // pred_check
      %p41 = pneg %p40
    $region19: #{tpu_custom_call.1} parent=1 // pred_check_branch
      %43 = sbr.rel (%p41) target = $region21
    $region20: #{tpu_custom_call.1} parent=1 // pred_region
      %vm44 = vcmask 7168
      %45 = vst.msk [vmem:[#allocation2] sm:$0xff] %vm44, -inf
      %46 = vst.msk [vmem:[#allocation2 + $0x8] sm:$0xff] %vm44, -inf
      %47 = vst.msk [vmem:[#allocation3] sm:$0xff] %vm44, 0.0
      %48 = vst.msk [vmem:[#allocation3 + $0x8] sm:$0xff] %vm44, 0.0
      %49 = vst.msk [vmem:[#allocation4] sm:$0xff] %vm44, 0.0
      %50 = vst.msk [vmem:[#allocation4 + $0x8] sm:$0xff] %vm44, 0.0
      %51 = vst.msk [vmem:[#allocation5] sm:$0xff] %vm44, 0.0
      %52 = vst.msk [vmem:[#allocation5 + $0x8] sm:$0xff] %vm44, 0.0
    $region21: #{tpu_custom_call.1} parent=1 // pred_fallthru
      _
    %v53 = vld [vmem:[#allocation6] sm:$0xff]
    %v54 = vld [vmem:[#allocation6 + $0x8] sm:$0xff]
    %v55 = vld [vmem:[#allocation9] sm:$0xff]
    %v56 = vld [vmem:[#allocation9 + $0x8] sm:$0xff]
    %v57 = vmul.f32 %v55, %v53
    %v58 = vmul.f32 %v56, %v54
    %v59 = vld [vmem:[#allocation2] sm:$0xff]
    %v60 = vld [vmem:[#allocation2 + $0x8] sm:$0xff]
    %61 = vmax.xlane.f32.xlu0 %v53
    %v62 = vpop.xlane.xlu0 %61
    %63 = vmax.xlane.f32.xlu0 %v54
    %v64 = vpop.xlane.xlu0 %63
    %v65 = vmax.f32 %v59, %v62
    %v66 = vmax.f32 %v60, %v64
    %v67 = vsub.f32 %v59, %v65
    %v68 = vsub.f32 %v60, %v66
    %v69 = vmul.f32 %v67, 1.442695
    %v70 = vpow.pop %v69
    %v71 = vmul.f32 %v68, 1.442695
    %v72 = vpow.pop %v71
    %v73 = vld [vmem:[#allocation3] sm:$0xff]
    %v74 = vld [vmem:[#allocation3 + $0x8] sm:$0xff]
    %v75 = vmul.f32 %v73, %v70
    %v76 = vmul.f32 %v74, %v72
    %78 = vset.pattern.permute.xlu0 0
    %79 = vperm.xlu0 %78, %v65
    %v80 = vpop.permute.xlu0 %79
    %83 = vset.pattern.permute.xlu0 0
    %84 = vperm.xlu0 %83, %v66
    %v85 = vpop.permute.xlu0 %84
    %v87 = vsub.f32 %v53, %v80
    %v88 = vsub.f32 %v54, %v85
    %v89 = vmul.f32 %v87, 1.442695
    %v90 = vpow.pop %v89
    %v91 = vmul.f32 %v88, 1.442695
    %v92 = vpow.pop %v91
    %93 = vadd.xlane.f32.xlu0 %v90
    %v94 = vpop.xlane.xlu0 %93
    %95 = vadd.xlane.f32.xlu0 %v92
    %v96 = vpop.xlane.xlu0 %95
    %v97 = vadd.f32 %v75, %v94
    %v98 = vadd.f32 %v76, %v96
    %vm99 = vcmask 7168
    %100 = vst.msk [vmem:[#allocation3] sm:$0xff] %vm99, %v97
    %101 = vst.msk [vmem:[#allocation3 + $0x8] sm:$0xff] %vm99, %v98
    %102 = vst.msk [vmem:[#allocation2] sm:$0xff] %vm99, %v65
    %103 = vst.msk [vmem:[#allocation2 + $0x8] sm:$0xff] %vm99, %v66
    %v104 = vld [vmem:[#allocation4] sm:$0xff]
    %v105 = vld [vmem:[#allocation4 + $0x8] sm:$0xff]
    %106 = vadd.xlane.f32.xlu0 %v57
    %v107 = vpop.xlane.xlu0 %106
    %108 = vadd.xlane.f32.xlu0 %v58
    %v109 = vpop.xlane.xlu0 %108
    %v110 = vadd.f32 %v104, %v107
    %v111 = vadd.f32 %v105, %v109
    %112 = vst.msk [vmem:[#allocation4] sm:$0xff] %vm99, %v110
    %113 = vst.msk [vmem:[#allocation4 + $0x8] sm:$0xff] %vm99, %v111
    %v114 = vld [vmem:[#allocation5] sm:$0xff]
    %v115 = vld [vmem:[#allocation5 + $0x8] sm:$0xff]
    %116 = vadd.xlane.f32.xlu0 %v55
    %v117 = vpop.xlane.xlu0 %116
    %118 = vadd.xlane.f32.xlu0 %v56
    %v119 = vpop.xlane.xlu0 %118
    %v120 = vadd.f32 %v114, %v117
    %v121 = vadd.f32 %v115, %v119
    %122 = vst.msk [vmem:[#allocation5] sm:$0xff] %vm99, %v120
    %123 = vst.msk [vmem:[#allocation5 + $0x8] sm:$0xff] %vm99, %v121
    // Predicated region
    $region22: #{tpu_custom_call.1} parent=1 // pred_check
      %p124 = pneg %p40
    $region23: #{tpu_custom_call.1} parent=1 // pred_check_branch
      %126 = sbr.rel (%p124) target = $region25
    $region24: #{tpu_custom_call.1} parent=1 // pred_region
      %v127 = vld [vmem:[#allocation4] sm:$0xff]
      %v128 = vld [vmem:[#allocation4 + $0x8] sm:$0xff]
      %v129 = vld [vmem:[#allocation2] sm:$0xff]
      %v130 = vld [vmem:[#allocation2 + $0x8] sm:$0xff]
      %v131 = vld [vmem:[#allocation3] sm:$0xff]
      %v132 = vld [vmem:[#allocation3 + $0x8] sm:$0xff]
      %v133 = vlog2.pop %v131
      %v134 = vmul.f32 %v133, 0.6931472
      %v135 = vlog2.pop %v132
      %v136 = vmul.f32 %v135, 0.6931472
      %v137 = vadd.f32 %v129, %v134
      %v138 = vadd.f32 %v130, %v136
      %v139 = vld [vmem:[#allocation5] sm:$0xff]
      %v140 = vld [vmem:[#allocation5 + $0x8] sm:$0xff]
      %v141 = vmul.f32 %v137, %v139
      %v142 = vmul.f32 %v138, %v140
      %v143 = vsub.f32 %v127, %v141
      %v144 = vsub.f32 %v128, %v142
      %v145 = vsel %vm99, %v143, 0.0
      %v146 = vsel %vm99, %v144, 0.0
      %v147 = vadd.f32 %v145, %v146
      %148 = vadd.xlane.f32.xlu0 %v147
      %v149 = vpop.xlane.xlu0 %148
      %v150 = vrot.slane %v149, 4
      %v151 = vadd.f32 %v149, %v150
      %v152 = vrot.slane %v151, 2
      %v153 = vadd.f32 %v151, %v152
      %v154 = vrot.slane %v153, 1
      %v155 = vadd.f32 %v153, %v154
      %s156 = vtos %v155
      %v157 = vlaneseq
      %v158 = vshrl.u32 %v157, 7
      %v159 = vlaneseq
      %v160 = vand.u32 %v159, 127
      %vm161 = vcmp.eq.s32.totalorder %v158, 0
      %vm162 = vcmp.eq.s32.totalorder %v160, 0
      %vm163 = vmand %vm161, %vm162
      %v164 = vstv %s156
      %v165 = vsel %vm163, %v164, 0.0
      %166 = vst [vmem:[#allocation11] sm:$0xff] %v165
    $region25: #{tpu_custom_call.1} parent=1 // pred_fallthru
      _
    // Predicated region
    $region26: #{tpu_custom_call.1} parent=1 // pred_check
      _
    $region27: #{tpu_custom_call.1} parent=1 // pred_check_branch
      %168 = sbr.rel (0) target = $region29
    $region28: #{tpu_custom_call.1} parent=1 // pred_region
      %s170 = ssub.s32 128, 128
      %171 = vsyncadd [#allocation8], %s170
      %s173 = sshll.u32 [#allocation11], 4
      %s174 = int_to_ptr.vmem [resolvable:$true] %s173
      %176 = dma.vmem_to_hbm [thread:$0]  %s174, 128, %s2, [#allocation8]
    $region29: #{tpu_custom_call.1} parent=1 // pred_fallthru
      _
    // Predicated region
    $region30: #{tpu_custom_call.1} parent=1 // pred_check
      _
    $region31: #{tpu_custom_call.1} parent=1 // pred_check_branch
      %178 = sbr.rel (0) target = $region33
    $region32: #{tpu_custom_call.1} parent=1 // pred_region
      %179 = dma.done [#allocation8], 128
    $region33: #{tpu_custom_call.1} parent=1 // pred_fallthru
      _
    %180 = vsyncpa [#allocation7], 1
    %181 = vsyncpa [#allocation10], 1
    %182 = vsyncpa [#allocation8], 1

</llo_original>
